<compile_context>
chip_gen: v7x
topology: tpu7x:2x2x1
jax: 0.10.0
libtpu: 0.0.40
codegen_flags: <defaults>
</compile_context>

<pallas_src>
import functools
import math

import jax
import jax.numpy as jnp
from jax import lax
from jax.experimental import pallas as pl
from jax.experimental.pallas import tpu as pltpu


def _pair(v):
    if isinstance(v, (tuple, list)):
        a, b = v
        return int(a), int(b)
    return int(v), int(v)


def _pick_tcout(cout):
    """Cout tile: prefer 128 (native MXU M tile; halves live f32 buffers vs 256)."""
    for cand in (128, 256):
        if cout % cand == 0 and cout > cand:
            return cand
    return cout


def _mosaic_params(semantics, block_bytes, scratch_bytes=0):
    """dimension_semantics + explicit scoped-VMEM limit computed from the actual
    (double-buffered) block sizes with headroom — v5e's default limit is only 16 MiB."""
    need = 2 * sum(block_bytes) + scratch_bytes
    limit = int(min(max(need * 5 // 4 + (8 << 20), 32 << 20), 100 << 20))
    return pltpu.CompilerParams(dimension_semantics=semantics,
                                vmem_limit_bytes=limit)


# ---------------------------------------------------------------------------------------
# Pointwise-matmul kernel: (TCout, K) @ (K, TQ).  Used by the 1x1 fast path and by the
# (rare) stride>1 path, whose im2col is prepared in the wrapper.
# ---------------------------------------------------------------------------------------
def _proj_kernel(x_ref, w_ref, o_ref):
    # x_ref: (1, K, TQ), w_ref: (TCout, K), o_ref: (1, TCout, TQ)
    o_ref[0] = jnp.dot(w_ref[...], x_ref[0],
                       preferred_element_type=jnp.float32).astype(o_ref.dtype)


def _proj_matmul(cols, w2d, out_dtype, oh, ow):
    """cols: (N, K, Q) with Q = OH*OW valid pixels, w2d: (Cout, K) -> (N, Cout, OH, OW)."""
    n, k, q = cols.shape
    cout = w2d.shape[0]
    tcout = _pick_tcout(cout)
    n_ct = cout // tcout
    # Lane tile over flattened pixels: full extent when small, else 2048 lanes (multiple
    # of 128; a partial last block is safe because the op is pointwise in Q).
    tq = q if q <= 4096 else 2048
    n_q = pl.cdiv(q, tq)

    blk = (k * tq * cols.dtype.itemsize,
           tcout * k * w2d.dtype.itemsize,
           tcout * tq * jnp.dtype(out_dtype).itemsize)
    out = pl.pallas_call(
        _proj_kernel,
        out_shape=jax.ShapeDtypeStruct((n, cout, q), out_dtype),
        grid=(n, n_ct, n_q),
        in_specs=[pl.BlockSpec((1, k, tq), lambda i, j, qb: (i, 0, qb)),
                  pl.BlockSpec((tcout, k), lambda i, j, qb: (j, 0))],
        out_specs=pl.BlockSpec((1, tcout, tq), lambda i, j, qb: (i, j, qb)),
        compiler_params=_mosaic_params(("parallel", "parallel", "arbitrary"), blk,
                                       scratch_bytes=tcout * tq * 4),
    )(cols, w2d)
    return out.reshape(n, cout, oh, ow)


# ---------------------------------------------------------------------------------------
# KxK stride-1 kernel: lane-shifted im2col into a VMEM scratch + one fused MXU matmul,
# then per-output-row valid-width stores (no wrapper trim pass).
# ---------------------------------------------------------------------------------------
def _conv_s1_kernel(x_ref, w_ref, o_ref, p_ref, *,
                    cinp, kh, kw, dh, dw, wp, oh, ow, nq):
    # x_ref: (1, Cinp, L)         zero-padded image, spatial flattened into lanes
    # w_ref: (TCout, KH*KW*Cinp)  tap-major / channel-minor weights
    # o_ref: (1, TCout, OH*OW)    valid-width NCHW-flat output
    # p_ref: (KH*KW*Cinp, OH*Wp)  im2col scratch (persists across Cout tiles)
    @pl.when(pl.program_id(1) == 0)          # build once per image, reuse for all Cout tiles
    def _build():
        for t in range(kh * kw):             # static -> fully unrolled contiguous copies
            r, c = divmod(t, kw)
            off = r * dh * wp + c * dw
            p_ref[t * cinp:(t + 1) * cinp, :] = x_ref[0, :, off:off + nq]

    res = jnp.dot(w_ref[...], p_ref[...],
                  preferred_element_type=jnp.float32).astype(o_ref.dtype)  # (TCout, OH*Wp)

    if ow == wp:                              # kw == 1: rows are already valid-width
        o_ref[0] = res
    else:                                     # drop the (Wp-OW) halo columns per row in VMEM
        for r in range(oh):                   # static offsets -> plain (masked) lane stores
            o_ref[0, :, r * ow:(r + 1) * ow] = res[:, r * wp:r * wp + ow]


def basic_conv2d(x_nchw, weight_oihw, *, stride=1, padding=0, dilation=1,
                 compute_dtype=None):
    """BasicConv2d.forward == nn.Conv2d(..., bias=False). NCHW in / NCHW out."""
    n, cin, h, w = x_nchw.shape
    cout, cin_w, kh, kw = weight_oihw.shape
    assert cin == cin_w
    sh, sw = _pair(stride)
    ph, pw = _pair(padding)
    dh, dw = _pair(dilation)
    oh = (h + 2 * ph - dh * (kh - 1) - 1) // sh + 1
    ow = (w + 2 * pw - dw * (kw - 1) - 1) // sw + 1
    # ow >= 1 also guarantees dw*(kw-1) <= Wp-1, so one slack row below is enough.
    assert oh >= 1 and ow >= 1
    out_dtype = x_nchw.dtype

    x = x_nchw if compute_dtype is None else x_nchw.astype(compute_dtype)

    # ---------------- stride > 1 (not used by BasicConv2d in this model) ---------------
    if sh != 1 or sw != 1:
        # TODO(synk): strided convs build their im2col with XLA in the wrapper and reuse
        # the matmul kernel; a fused strided Pallas path is unnecessary for this module.
        xp = jnp.pad(x, ((0, 0), (0, 0), (ph, ph), (pw, pw)))
        taps = []
        for ti in range(kh):
            for tj in range(kw):
                taps.append(lax.slice(
                    xp, (0, 0, ti * dh, tj * dw),
                    (n, cin, ti * dh + (oh - 1) * sh + 1, tj * dw + (ow - 1) * sw + 1),
                    (1, 1, sh, sw)))                              # (N, Cin, OH, OW)
        cols = jnp.stack(taps, axis=1).reshape(n, kh * kw * cin, oh * ow)
        w2d = jnp.transpose(weight_oihw, (0, 2, 3, 1)).reshape(cout, kh * kw * cin)
        w2d = w2d if compute_dtype is None else w2d.astype(compute_dtype)
        return _proj_matmul(cols, w2d, out_dtype, oh, ow)

    # ---------------- 1x1 fast path: no im2col, no trim, no scratch --------------------
    if kh == 1 and kw == 1:
        if ph or pw:
            x = jnp.pad(x, ((0, 0), (0, 0), (ph, ph), (pw, pw)))
        cols = x.reshape(n, cin, oh * ow)        # OH == H+2ph, OW == W+2pw for 1x1, s=1
        w2d = weight_oihw.reshape(cout, cin)
        w2d = w2d if compute_dtype is None else w2d.astype(compute_dtype)
        return _proj_matmul(cols, w2d, out_dtype, oh, ow)

    # ---------------- KxK, stride == 1 hot path ----------------------------------------
    cinp = (cin + 7) // 8 * 8                    # sublane-aligned K (unmasked im2col stores)
    k_dim = kh * kw * cinp
    wp = w + 2 * pw
    nq = oh * wp                                 # full-width rows in lanes (contiguous taps)

    # Weights -> (Cout, KH*KW*Cinp), tap-major / channel-minor (matches p_ref row order).
    w_t = jnp.transpose(weight_oihw, (0, 2, 3, 1)).reshape(cout, kh * kw, cin)
    if cinp != cin:
        w_t = jnp.pad(w_t, ((0, 0), (0, 0), (0, cinp - cin)))
    w2d = w_t.reshape(cout, k_dim)
    w2d = w2d if compute_dtype is None else w2d.astype(compute_dtype)

    # One pad: channel alignment + conv halo + one slack row so the last tap's
    # lane-shifted slice stays in bounds.
    extra_rows = 1 if kw > 1 else 0
    xpad = jnp.pad(x, ((0, 0), (0, cinp - cin), (ph, ph + extra_rows), (pw, pw)))
    l_flat = (h + 2 * ph + extra_rows) * wp
    x_flat = xpad.reshape(n, cinp, l_flat)        # trailing-dim reshape: no data movement

    tcout = _pick_tcout(cout)
    n_ct = cout // tcout

    itemsize = x_flat.dtype.itemsize
    blk = (cinp * l_flat * itemsize,
           tcout * k_dim * itemsize,
           tcout * oh * ow * jnp.dtype(out_dtype).itemsize)
    scratch_bytes = k_dim * nq * itemsize + tcout * nq * 4   # im2col + f32 matmul result

    out_flat = pl.pallas_call(
        functools.partial(_conv_s1_kernel, cinp=cinp, kh=kh, kw=kw, dh=dh, dw=dw,
                          wp=wp, oh=oh, ow=ow, nq=nq),
        out_shape=jax.ShapeDtypeStruct((n, cout, oh * ow), out_dtype),
        grid=(n, n_ct),
        in_specs=[pl.BlockSpec((1, cinp, l_flat), lambda i, j: (i, 0, 0)),
                  pl.BlockSpec((tcout, k_dim), lambda i, j: (j, 0))],
        out_specs=pl.BlockSpec((1, tcout, oh * ow), lambda i, j: (i, j, 0)),
        scratch_shapes=[pltpu.VMEM((k_dim, nq), x_flat.dtype)],
        # Cout axis must stay sequential ("arbitrary"): tiles j>0 reuse the im2col scratch
        # built at j==0.  TODO(synk): very large spatial layers would additionally want an
        # OH-row-block grid axis (halo handling) for deeper pipelining / megacore rows.
        compiler_params=_mosaic_params(("parallel", "arbitrary"), blk,
                                       scratch_bytes=scratch_bytes),
    )(x_flat, w2d)

    return out_flat.reshape(n, cout, oh, ow)      # free trailing-dim reshape; no trim pass


def init_conv_weight(key, out_planes, in_planes, kh, kw, dtype=jnp.float32):
    """Deterministic init mimicking PyTorch Conv2d default (kaiming_uniform, a=sqrt(5))."""
    fan_in = in_planes * kh * kw
    bound = 1.0 / math.sqrt(fan_in)
    return jax.random.uniform(
        key, (out_planes, in_planes, kh, kw), dtype=dtype, minval=-bound, maxval=bound)


def _reference(x, w, stride, padding, dilation):
    s, p, d = _pair(stride), _pair(padding), _pair(dilation)
    return lax.conv_general_dilated(
        x, w, window_strides=s,
        padding=((p[0], p[0]), (p[1], p[1])),
        rhs_dilation=d,
        dimension_numbers=("NCHW", "OIHW", "NCHW"))


if __name__ == "__main__":
    key = jax.random.PRNGKey(0)
    kx, k3, k1, kd, ks, kc = jax.random.split(key, 6)

    x = jax.random.normal(kx, (2, 4, 16, 16), dtype=jnp.float32)   # NCHW

    # BasicConv2d(4, 8, kernel_size=3, padding=1): KxK hot path (cin padded 4->8).
    w3 = init_conv_weight(k3, 8, 4, 3, 3)
    out3 = jax.block_until_ready(basic_conv2d(x, w3, padding=1))
    ref3 = _reference(x, w3, 1, 1, 1)
    assert out3.shape == ref3.shape == (2, 8, 16, 16)
    assert jnp.allclose(out3, ref3, atol=1e-3, rtol=1e-3)

    # BasicConv2d(4, 16, kernel_size=1): 1x1 fast path (no im2col, no trim).
    w1 = init_conv_weight(k1, 16, 4, 1, 1)
    out1 = jax.block_until_ready(basic_conv2d(x, w1))
    ref1 = _reference(x, w1, 1, 0, 1)
    assert out1.shape == ref1.shape == (2, 16, 16, 16)
    assert jnp.allclose(out1, ref1, atol=1e-3, rtol=1e-3)

    # BasicConv2d(4, 8, kernel_size=3, padding=2, dilation=2): dilated taps.
    wd = init_conv_weight(kd, 8, 4, 3, 3)
    outd = jax.block_until_ready(basic_conv2d(x, wd, padding=2, dilation=2))
    refd = _reference(x, wd, 1, 2, 2)
    assert outd.shape == refd.shape == (2, 8, 16, 16)
    assert jnp.allclose(outd, refd, atol=1e-3, rtol=1e-3)

    # Wide output: exercises Cout tiling (tcout=128) + im2col reuse across Cout tiles.
    wc = init_conv_weight(kc, 256, 4, 3, 3)
    outc = jax.block_until_ready(basic_conv2d(x, wc, padding=1))
    refc = _reference(x, wc, 1, 1, 1)
    assert outc.shape == refc.shape == (2, 256, 16, 16)
    assert jnp.allclose(outc, refc, atol=1e-3, rtol=1e-3)

    # stride=2 fallback (wrapper im2col + matmul kernel).
    ws = init_conv_weight(ks, 8, 4, 3, 3)
    outs = jax.block_until_ready(basic_conv2d(x, ws, stride=2, padding=1))
    refs = _reference(x, ws, 2, 1, 1)
    assert outs.shape == refs.shape == (2, 8, 8, 8)
    assert jnp.allclose(outs, refs, atol=1e-3, rtol=1e-3)

    # bf16 operands / f32 accumulation (native MXU rate on v6e/v7x).
    outb = jax.block_until_ready(basic_conv2d(x, w3, padding=1,
                                              compute_dtype=jnp.bfloat16))
    assert jnp.allclose(outb, ref3, atol=5e-2, rtol=5e-2)

    print("KERNEL_OK")
</pallas_src>

<mosaic_0001>
module attributes {stable_mosaic.version = 11 : i64} {
  func.func @_conv_s1_kernel(%arg0: i32, %arg1: i32, %arg2: memref<1x8x342xf32, #tpu.memory_space<vmem>>, %arg3: memref<8x72xf32, #tpu.memory_space<vmem>>, %arg4: memref<1x8x256xf32, #tpu.memory_space<vmem>>, %arg5: memref<72x288xf32, #tpu.memory_space<vmem>>) attributes {dimension_semantics = [#tpu.dimension_semantics<parallel>, #tpu.dimension_semantics<arbitrary>], iteration_bounds = array<i64: 2, 1>, scalar_prefetch = 0 : i64, scratch_operands = 1 : i64, tpu.core_type = #tpu.core_type<tc>, window_params = [{transform_indices = @transform_0, window_bounds = array<i64: 1, 8, 342>}, {transform_indices = @transform_1, window_bounds = array<i64: 8, 72>}, {transform_indices = @transform_2, window_bounds = array<i64: 1, 8, 256>}]} {
    %c0_i32 = arith.constant 0 : i32
    %0 = arith.cmpi eq, %arg1, %c0_i32 : i32
    %1 = arith.extui %0 : i1 to i32
    %c0_i32_0 = arith.constant 0 : i32
    %2 = arith.cmpi ne, %1, %c0_i32_0 : i32
    scf.if %2 {
      %c0_37 = arith.constant 0 : index
      %c0_38 = arith.constant 0 : index
      %c0_39 = arith.constant 0 : index
      %70 = vector.load %arg2[%c0_37, %c0_38, %c0_39] : memref<1x8x342xf32, #tpu.memory_space<vmem>>, vector<1x8x288xf32>
      %71 = vector.shape_cast %70 : vector<1x8x288xf32> to vector<8x288xf32>
      %c0_40 = arith.constant 0 : index
      %c0_41 = arith.constant 0 : index
      %72 = vector.load %arg5[%c0_40, %c0_41] : memref<72x288xf32, #tpu.memory_space<vmem>>, vector<8x288xf32>
      tpu.vector_store %arg5[%c0_40, %c0_41], %71 {strides = array<i32>} : memref<72x288xf32, #tpu.memory_space<vmem>>, vector<8x288xf32>,
      %c0_42 = arith.constant 0 : index
      %c0_43 = arith.constant 0 : index
      %c1 = arith.constant 1 : index
      %73 = vector.load %arg2[%c0_42, %c0_43, %c1] : memref<1x8x342xf32, #tpu.memory_space<vmem>>, vector<1x8x288xf32>
      %74 = vector.shape_cast %73 : vector<1x8x288xf32> to vector<8x288xf32>
      %c8 = arith.constant 8 : index
      %c0_44 = arith.constant 0 : index
      %75 = vector.load %arg5[%c8, %c0_44] : memref<72x288xf32, #tpu.memory_space<vmem>>, vector<8x288xf32>
      tpu.vector_store %arg5[%c8, %c0_44], %74 {strides = array<i32>} : memref<72x288xf32, #tpu.memory_space<vmem>>, vector<8x288xf32>,
      %c0_45 = arith.constant 0 : index
      %c0_46 = arith.constant 0 : index
      %c2 = arith.constant 2 : index
      %76 = vector.load %arg2[%c0_45, %c0_46, %c2] : memref<1x8x342xf32, #tpu.memory_space<vmem>>, vector<1x8x288xf32>
      %77 = vector.shape_cast %76 : vector<1x8x288xf32> to vector<8x288xf32>
      %c16_47 = arith.constant 16 : index
      %c0_48 = arith.constant 0 : index
      %78 = vector.load %arg5[%c16_47, %c0_48] : memref<72x288xf32, #tpu.memory_space<vmem>>, vector<8x288xf32>
      tpu.vector_store %arg5[%c16_47, %c0_48], %77 {strides = array<i32>} : memref<72x288xf32, #tpu.memory_space<vmem>>, vector<8x288xf32>,
      %c0_49 = arith.constant 0 : index
      %c0_50 = arith.constant 0 : index
      %c18 = arith.constant 18 : index
      %79 = vector.load %arg2[%c0_49, %c0_50, %c18] : memref<1x8x342xf32, #tpu.memory_space<vmem>>, vector<1x8x288xf32>
      %80 = vector.shape_cast %79 : vector<1x8x288xf32> to vector<8x288xf32>
      %c24 = arith.constant 24 : index
      %c0_51 = arith.constant 0 : index
      %81 = vector.load %arg5[%c24, %c0_51] : memref<72x288xf32, #tpu.memory_space<vmem>>, vector<8x288xf32>
      tpu.vector_store %arg5[%c24, %c0_51], %80 {strides = array<i32>} : memref<72x288xf32, #tpu.memory_space<vmem>>, vector<8x288xf32>,
      %c0_52 = arith.constant 0 : index
      %c0_53 = arith.constant 0 : index
      %c19 = arith.constant 19 : index
      %82 = vector.load %arg2[%c0_52, %c0_53, %c19] : memref<1x8x342xf32, #tpu.memory_space<vmem>>, vector<1x8x288xf32>
      %83 = vector.shape_cast %82 : vector<1x8x288xf32> to vector<8x288xf32>
      %c32_54 = arith.constant 32 : index
      %c0_55 = arith.constant 0 : index
      %84 = vector.load %arg5[%c32_54, %c0_55] : memref<72x288xf32, #tpu.memory_space<vmem>>, vector<8x288xf32>
      tpu.vector_store %arg5[%c32_54, %c0_55], %83 {strides = array<i32>} : memref<72x288xf32, #tpu.memory_space<vmem>>, vector<8x288xf32>,
      %c0_56 = arith.constant 0 : index
      %c0_57 = arith.constant 0 : index
      %c20 = arith.constant 20 : index
      %85 = vector.load %arg2[%c0_56, %c0_57, %c20] : memref<1x8x342xf32, #tpu.memory_space<vmem>>, vector<1x8x288xf32>
      %86 = vector.shape_cast %85 : vector<1x8x288xf32> to vector<8x288xf32>
      %c40 = arith.constant 40 : index
      %c0_58 = arith.constant 0 : index
      %87 = vector.load %arg5[%c40, %c0_58] : memref<72x288xf32, #tpu.memory_space<vmem>>, vector<8x288xf32>
      tpu.vector_store %arg5[%c40, %c0_58], %86 {strides = array<i32>} : memref<72x288xf32, #tpu.memory_space<vmem>>, vector<8x288xf32>,
      %c0_59 = arith.constant 0 : index
      %c0_60 = arith.constant 0 : index
      %c36 = arith.constant 36 : index
      %88 = vector.load %arg2[%c0_59, %c0_60, %c36] : memref<1x8x342xf32, #tpu.memory_space<vmem>>, vector<1x8x288xf32>
      %89 = vector.shape_cast %88 : vector<1x8x288xf32> to vector<8x288xf32>
      %c48_61 = arith.constant 48 : index
      %c0_62 = arith.constant 0 : index
      %90 = vector.load %arg5[%c48_61, %c0_62] : memref<72x288xf32, #tpu.memory_space<vmem>>, vector<8x288xf32>
      tpu.vector_store %arg5[%c48_61, %c0_62], %89 {strides = array<i32>} : memref<72x288xf32, #tpu.memory_space<vmem>>, vector<8x288xf32>,
      %c0_63 = arith.constant 0 : index
      %c0_64 = arith.constant 0 : index
      %c37 = arith.constant 37 : index
      %91 = vector.load %arg2[%c0_63, %c0_64, %c37] : memref<1x8x342xf32, #tpu.memory_space<vmem>>, vector<1x8x288xf32>
      %92 = vector.shape_cast %91 : vector<1x8x288xf32> to vector<8x288xf32>
      %c56 = arith.constant 56 : index
      %c0_65 = arith.constant 0 : index
      %93 = vector.load %arg5[%c56, %c0_65] : memref<72x288xf32, #tpu.memory_space<vmem>>, vector<8x288xf32>
      tpu.vector_store %arg5[%c56, %c0_65], %92 {strides = array<i32>} : memref<72x288xf32, #tpu.memory_space<vmem>>, vector<8x288xf32>,
      %c0_66 = arith.constant 0 : index
      %c0_67 = arith.constant 0 : index
      %c38 = arith.constant 38 : index
      %94 = vector.load %arg2[%c0_66, %c0_67, %c38] : memref<1x8x342xf32, #tpu.memory_space<vmem>>, vector<1x8x288xf32>
      %95 = vector.shape_cast %94 : vector<1x8x288xf32> to vector<8x288xf32>
      %c64_68 = arith.constant 64 : index
      %c0_69 = arith.constant 0 : index
      %96 = vector.load %arg5[%c64_68, %c0_69] : memref<72x288xf32, #tpu.memory_space<vmem>>, vector<8x288xf32>
      tpu.vector_store %arg5[%c64_68, %c0_69], %95 {strides = array<i32>} : memref<72x288xf32, #tpu.memory_space<vmem>>, vector<8x288xf32>,
    } else {
    }
    %c0 = arith.constant 0 : index
    %c0_1 = arith.constant 0 : index
    %3 = vector.load %arg3[%c0, %c0_1] : memref<8x72xf32, #tpu.memory_space<vmem>>, vector<8x72xf32>
    %c0_2 = arith.constant 0 : index
    %c0_3 = arith.constant 0 : index
    %4 = vector.load %arg5[%c0_2, %c0_3] : memref<72x288xf32, #tpu.memory_space<vmem>>, vector<72x288xf32>
    %cst = arith.constant dense<0.000000e+00> : vector<8x288xf32>
    %5 = tpu.matmul %3, %4, %cst {dimension_numbers = #tpu.dot_dimension_numbers<[1], [0], [0], [1], [0, 0, 1, 1], [], []>} : vector<8x72xf32>, vector<72x288xf32>, vector<8x288xf32> -> vector<8x288xf32>
    %6 = vector.extract_strided_slice %5 {offsets = [0, 0], sizes = [8, 16], strides = [1, 1]} : vector<8x288xf32> to vector<8x16xf32>
    %c0_4 = arith.constant 0 : index
    %c0_5 = arith.constant 0 : index
    %c0_6 = arith.constant 0 : index
    %7 = vector.load %arg4[%c0_4, %c0_5, %c0_6] : memref<1x8x256xf32, #tpu.memory_space<vmem>>, vector<1x8x16xf32>
    %8 = vector.shape_cast %7 : vector<1x8x16xf32> to vector<8x16xf32>
    %9 = vector.shape_cast %6 : vector<8x16xf32> to vector<1x8x16xf32>
    tpu.vector_store %arg4[%c0_4, %c0_5, %c0_6], %9 {strides = array<i32>} : memref<1x8x256xf32, #tpu.memory_space<vmem>>, vector<1x8x16xf32>,
    %10 = vector.extract_strided_slice %5 {offsets = [0, 18], sizes = [8, 16], strides = [1, 1]} : vector<8x288xf32> to vector<8x16xf32>
    %c0_7 = arith.constant 0 : index
    %c0_8 = arith.constant 0 : index
    %c16 = arith.constant 16 : index
    %11 = vector.load %arg4[%c0_7, %c0_8, %c16] : memref<1x8x256xf32, #tpu.memory_space<vmem>>, vector<1x8x16xf32>
    %12 = vector.shape_cast %11 : vector<1x8x16xf32> to vector<8x16xf32>
    %13 = vector.shape_cast %10 : vector<8x16xf32> to vector<1x8x16xf32>
    tpu.vector_store %arg4[%c0_7, %c0_8, %c16], %13 {strides = array<i32>} : memref<1x8x256xf32, #tpu.memory_space<vmem>>, vector<1x8x16xf32>,
    %14 = vector.extract_strided_slice %5 {offsets = [0, 36], sizes = [8, 16], strides = [1, 1]} : vector<8x288xf32> to vector<8x16xf32>
    %c0_9 = arith.constant 0 : index
    %c0_10 = arith.constant 0 : index
    %c32 = arith.constant 32 : index
    %15 = vector.load %arg4[%c0_9, %c0_10, %c32] : memref<1x8x256xf32, #tpu.memory_space<vmem>>, vector<1x8x16xf32>
    %16 = vector.shape_cast %15 : vector<1x8x16xf32> to vector<8x16xf32>
    %17 = vector.shape_cast %14 : vector<8x16xf32> to vector<1x8x16xf32>
    tpu.vector_store %arg4[%c0_9, %c0_10, %c32], %17 {strides = array<i32>} : memref<1x8x256xf32, #tpu.memory_space<vmem>>, vector<1x8x16xf32>,
    %18 = vector.extract_strided_slice %5 {offsets = [0, 54], sizes = [8, 16], strides = [1, 1]} : vector<8x288xf32> to vector<8x16xf32>
    %c0_11 = arith.constant 0 : index
    %c0_12 = arith.constant 0 : index
    %c48 = arith.constant 48 : index
    %19 = vector.load %arg4[%c0_11, %c0_12, %c48] : memref<1x8x256xf32, #tpu.memory_space<vmem>>, vector<1x8x16xf32>
    %20 = vector.shape_cast %19 : vector<1x8x16xf32> to vector<8x16xf32>
    %21 = vector.shape_cast %18 : vector<8x16xf32> to vector<1x8x16xf32>
    tpu.vector_store %arg4[%c0_11, %c0_12, %c48], %21 {strides = array<i32>} : memref<1x8x256xf32, #tpu.memory_space<vmem>>, vector<1x8x16xf32>,
    %22 = vector.extract_strided_slice %5 {offsets = [0, 72], sizes = [8, 16], strides = [1, 1]} : vector<8x288xf32> to vector<8x16xf32>
    %c0_13 = arith.constant 0 : index
    %c0_14 = arith.constant 0 : index
    %c64 = arith.constant 64 : index
    %23 = vector.load %arg4[%c0_13, %c0_14, %c64] : memref<1x8x256xf32, #tpu.memory_space<vmem>>, vector<1x8x16xf32>
    %24 = vector.shape_cast %23 : vector<1x8x16xf32> to vector<8x16xf32>
    %25 = vector.shape_cast %22 : vector<8x16xf32> to vector<1x8x16xf32>
    tpu.vector_store %arg4[%c0_13, %c0_14, %c64], %25 {strides = array<i32>} : memref<1x8x256xf32, #tpu.memory_space<vmem>>, vector<1x8x16xf32>,
    %26 = vector.extract_strided_slice %5 {offsets = [0, 90], sizes = [8, 16], strides = [1, 1]} : vector<8x288xf32> to vector<8x16xf32>
    %c0_15 = arith.constant 0 : index
    %c0_16 = arith.constant 0 : index
    %c80 = arith.constant 80 : index
    %27 = vector.load %arg4[%c0_15, %c0_16, %c80] : memref<1x8x256xf32, #tpu.memory_space<vmem>>, vector<1x8x16xf32>
    %28 = vector.shape_cast %27 : vector<1x8x16xf32> to vector<8x16xf32>
    %29 = vector.shape_cast %26 : vector<8x16xf32> to vector<1x8x16xf32>
    tpu.vector_store %arg4[%c0_15, %c0_16, %c80], %29 {strides = array<i32>} : memref<1x8x256xf32, #tpu.memory_space<vmem>>, vector<1x8x16xf32>,
    %30 = vector.extract_strided_slice %5 {offsets = [0, 108], sizes = [8, 16], strides = [1, 1]} : vector<8x288xf32> to vector<8x16xf32>
    %c0_17 = arith.constant 0 : index
    %c0_18 = arith.constant 0 : index
    %c96 = arith.constant 96 : index
    %31 = vector.load %arg4[%c0_17, %c0_18, %c96] : memref<1x8x256xf32, #tpu.memory_space<vmem>>, vector<1x8x16xf32>
    %32 = vector.shape_cast %31 : vector<1x8x16xf32> to vector<8x16xf32>
    %33 = vector.shape_cast %30 : vector<8x16xf32> to vector<1x8x16xf32>
    tpu.vector_store %arg4[%c0_17, %c0_18, %c96], %33 {strides = array<i32>} : memref<1x8x256xf32, #tpu.memory_space<vmem>>, vector<1x8x16xf32>,
    %34 = vector.extract_strided_slice %5 {offsets = [0, 126], sizes = [8, 16], strides = [1, 1]} : vector<8x288xf32> to vector<8x16xf32>
    %c0_19 = arith.constant 0 : index
    %c0_20 = arith.constant 0 : index
    %c112 = arith.constant 112 : index
    %35 = vector.load %arg4[%c0_19, %c0_20, %c112] : memref<1x8x256xf32, #tpu.memory_space<vmem>>, vector<1x8x16xf32>
    %36 = vector.shape_cast %35 : vector<1x8x16xf32> to vector<8x16xf32>
    %37 = vector.shape_cast %34 : vector<8x16xf32> to vector<1x8x16xf32>
    tpu.vector_store %arg4[%c0_19, %c0_20, %c112], %37 {strides = array<i32>} : memref<1x8x256xf32, #tpu.memory_space<vmem>>, vector<1x8x16xf32>,
    %38 = vector.extract_strided_slice %5 {offsets = [0, 144], sizes = [8, 16], strides = [1, 1]} : vector<8x288xf32> to vector<8x16xf32>
    %c0_21 = arith.constant 0 : index
    %c0_22 = arith.constant 0 : index
    %c128 = arith.constant 128 : index
    %39 = vector.load %arg4[%c0_21, %c0_22, %c128] : memref<1x8x256xf32, #tpu.memory_space<vmem>>, vector<1x8x16xf32>
    %40 = vector.shape_cast %39 : vector<1x8x16xf32> to vector<8x16xf32>
    %41 = vector.shape_cast %38 : vector<8x16xf32> to vector<1x8x16xf32>
    tpu.vector_store %arg4[%c0_21, %c0_22, %c128], %41 {strides = array<i32>} : memref<1x8x256xf32, #tpu.memory_space<vmem>>, vector<1x8x16xf32>,
    %42 = vector.extract_strided_slice %5 {offsets = [0, 162], sizes = [8, 16], strides = [1, 1]} : vector<8x288xf32> to vector<8x16xf32>
    %c0_23 = arith.constant 0 : index
    %c0_24 = arith.constant 0 : index
    %c144 = arith.constant 144 : index
    %43 = vector.load %arg4[%c0_23, %c0_24, %c144] : memref<1x8x256xf32, #tpu.memory_space<vmem>>, vector<1x8x16xf32>
    %44 = vector.shape_cast %43 : vector<1x8x16xf32> to vector<8x16xf32>
    %45 = vector.shape_cast %42 : vector<8x16xf32> to vector<1x8x16xf32>
    tpu.vector_store %arg4[%c0_23, %c0_24, %c144], %45 {strides = array<i32>} : memref<1x8x256xf32, #tpu.memory_space<vmem>>, vector<1x8x16xf32>,
    %46 = vector.extract_strided_slice %5 {offsets = [0, 180], sizes = [8, 16], strides = [1, 1]} : vector<8x288xf32> to vector<8x16xf32>
    %c0_25 = arith.constant 0 : index
    %c0_26 = arith.constant 0 : index
    %c160 = arith.constant 160 : index
    %47 = vector.load %arg4[%c0_25, %c0_26, %c160] : memref<1x8x256xf32, #tpu.memory_space<vmem>>, vector<1x8x16xf32>
    %48 = vector.shape_cast %47 : vector<1x8x16xf32> to vector<8x16xf32>
    %49 = vector.shape_cast %46 : vector<8x16xf32> to vector<1x8x16xf32>
    tpu.vector_store %arg4[%c0_25, %c0_26, %c160], %49 {strides = array<i32>} : memref<1x8x256xf32, #tpu.memory_space<vmem>>, vector<1x8x16xf32>,
    %50 = vector.extract_strided_slice %5 {offsets = [0, 198], sizes = [8, 16], strides = [1, 1]} : vector<8x288xf32> to vector<8x16xf32>
    %c0_27 = arith.constant 0 : index
    %c0_28 = arith.constant 0 : index
    %c176 = arith.constant 176 : index
    %51 = vector.load %arg4[%c0_27, %c0_28, %c176] : memref<1x8x256xf32, #tpu.memory_space<vmem>>, vector<1x8x16xf32>
    %52 = vector.shape_cast %51 : vector<1x8x16xf32> to vector<8x16xf32>
    %53 = vector.shape_cast %50 : vector<8x16xf32> to vector<1x8x16xf32>
    tpu.vector_store %arg4[%c0_27, %c0_28, %c176], %53 {strides = array<i32>} : memref<1x8x256xf32, #tpu.memory_space<vmem>>, vector<1x8x16xf32>,
    %54 = vector.extract_strided_slice %5 {offsets = [0, 216], sizes = [8, 16], strides = [1, 1]} : vector<8x288xf32> to vector<8x16xf32>
    %c0_29 = arith.constant 0 : index
    %c0_30 = arith.constant 0 : index
    %c192 = arith.constant 192 : index
    %55 = vector.load %arg4[%c0_29, %c0_30, %c192] : memref<1x8x256xf32, #tpu.memory_space<vmem>>, vector<1x8x16xf32>
    %56 = vector.shape_cast %55 : vector<1x8x16xf32> to vector<8x16xf32>
    %57 = vector.shape_cast %54 : vector<8x16xf32> to vector<1x8x16xf32>
    tpu.vector_store %arg4[%c0_29, %c0_30, %c192], %57 {strides = array<i32>} : memref<1x8x256xf32, #tpu.memory_space<vmem>>, vector<1x8x16xf32>,
    %58 = vector.extract_strided_slice %5 {offsets = [0, 234], sizes = [8, 16], strides = [1, 1]} : vector<8x288xf32> to vector<8x16xf32>
    %c0_31 = arith.constant 0 : index
    %c0_32 = arith.constant 0 : index
    %c208 = arith.constant 208 : index
    %59 = vector.load %arg4[%c0_31, %c0_32, %c208] : memref<1x8x256xf32, #tpu.memory_space<vmem>>, vector<1x8x16xf32>
    %60 = vector.shape_cast %59 : vector<1x8x16xf32> to vector<8x16xf32>
    %61 = vector.shape_cast %58 : vector<8x16xf32> to vector<1x8x16xf32>
    tpu.vector_store %arg4[%c0_31, %c0_32, %c208], %61 {strides = array<i32>} : memref<1x8x256xf32, #tpu.memory_space<vmem>>, vector<1x8x16xf32>,
    %62 = vector.extract_strided_slice %5 {offsets = [0, 252], sizes = [8, 16], strides = [1, 1]} : vector<8x288xf32> to vector<8x16xf32>
    %c0_33 = arith.constant 0 : index
    %c0_34 = arith.constant 0 : index
    %c224 = arith.constant 224 : index
    %63 = vector.load %arg4[%c0_33, %c0_34, %c224] : memref<1x8x256xf32, #tpu.memory_space<vmem>>, vector<1x8x16xf32>
    %64 = vector.shape_cast %63 : vector<1x8x16xf32> to vector<8x16xf32>
    %65 = vector.shape_cast %62 : vector<8x16xf32> to vector<1x8x16xf32>
    tpu.vector_store %arg4[%c0_33, %c0_34, %c224], %65 {strides = array<i32>} : memref<1x8x256xf32, #tpu.memory_space<vmem>>, vector<1x8x16xf32>,
    %66 = vector.extract_strided_slice %5 {offsets = [0, 270], sizes = [8, 16], strides = [1, 1]} : vector<8x288xf32> to vector<8x16xf32>
    %c0_35 = arith.constant 0 : index
    %c0_36 = arith.constant 0 : index
    %c240 = arith.constant 240 : index
    %67 = vector.load %arg4[%c0_35, %c0_36, %c240] : memref<1x8x256xf32, #tpu.memory_space<vmem>>, vector<1x8x16xf32>
    %68 = vector.shape_cast %67 : vector<1x8x16xf32> to vector<8x16xf32>
    %69 = vector.shape_cast %66 : vector<8x16xf32> to vector<1x8x16xf32>
    tpu.vector_store %arg4[%c0_35, %c0_36, %c240], %69 {strides = array<i32>} : memref<1x8x256xf32, #tpu.memory_space<vmem>>, vector<1x8x16xf32>,
    return
  }
  func.func @transform_0(%arg0: i32, %arg1: i32) -> (i32, i32, i32) {
    %c0_i32 = arith.constant 0 : i32
    %c0_i32_0 = arith.constant 0 : i32
    %c0_i32_1 = arith.constant 0 : i32
    return %arg0, %c0_i32, %c0_i32_0 : i32, i32, i32
  }
  func.func @transform_1(%arg0: i32, %arg1: i32) -> (i32, i32) {
    %c0_i32 = arith.constant 0 : i32
    %c0_i32_0 = arith.constant 0 : i32
    return %arg1, %c0_i32 : i32, i32
  }
  func.func @transform_2(%arg0: i32, %arg1: i32) -> (i32, i32, i32) {
    %c0_i32 = arith.constant 0 : i32
    %c0_i32_0 = arith.constant 0 : i32
    return %arg0, %arg1, %c0_i32 : i32, i32, i32
  }
}

</mosaic_0001>

<llo_original>
// kernel: tpu_custom_call.1
$region0: #{tpu_custom_call.1}
  #allocation0 [shape = 'u32[]', space=smem, size = 0x4, offset = 0x4, fixed_abs, tag = 'smem constant byte address 0x4 - core index']
  #allocation1 [shape = 'u32[144,128]{1,0:T(1,128)}', space=vmem, size = 0x12000, scoped, tag = 'internal scratch']
  #allocation2 [shape = 'f32[72,288]{1,0:T(8,128)}', space=vmem, size = 0x1b000, scoped, tag = 'scratch operand']
  %s0 = inlined_call_operand.hbm [shape: f32[2,8,342], index: 0, kind: input, shape index: {}]
  %s1 = inlined_call_operand.hbm [shape: f32[8,72], index: 1, kind: input, shape index: {}]
  %s2 = inlined_call_operand.hbm [shape: f32[2,8,256], index: 2, kind: output, shape index: {}]
  %s3 = sld [smem:[#allocation0]]
  $region53: #{tpu_custom_call.1} parent=0
    _
  %s5 = ssub.s32 1, %s3
  %s6 = scalar_select 0, %s5, %s3
  $region1: #{tpu_custom_call.1} parent=0
    #allocation3 [shape = 'u8[24576]{0}', space=vmem, size = 0x6000, scoped, tag = 'input window, operand 0']
    #allocation4 [shape = 's32[2]{0}', space=sflag, size = 0x8, scoped, tag = 'scoped memory for tpu_custom_call.1']
    #allocation5 [shape = 's32[2]{0}', space=sflag, size = 0x8, scoped, tag = 'scoped memory for tpu_custom_call.1']
    #allocation6 [shape = 'u8[4096]{0}', space=vmem, size = 0x1000, scoped, tag = 'input window, operand 1, single buffered']
    #allocation7 [shape = 's32[1]{0}', space=sflag, size = 0x4, scoped, tag = 'scoped memory for tpu_custom_call.1']
    #allocation8 [shape = 'u8[16384]{0}', space=vmem, size = 0x4000, scoped, tag = 'output window, operand 0']
    %7 = vsyncpa [#allocation4], 0
    %s8 = scalar_lea.sflag [#allocation4], 1
    %9 = vsyncpa %s8, 0
    %10 = vsyncpa [#allocation7], 0
    %11 = vsyncpa [#allocation5], 0
    %s12 = scalar_lea.sflag [#allocation5], 1
    %13 = vsyncpa %s12, 0
    loop: start=0, step=1, limit=4
    $region2: #{tpu_custom_call.1} parent=1 // loop_pre_header
      _
    $region3: #{tpu_custom_call.1} parent=1 // loop_header
      %s15 = sphi 0, %s19
      %p16 = scmp.ge.s32.totalorder %s15, 4
      %s22 = sphi 0, %s34
      %s23 = sphi 0, %s30
      %s24 = sphi 0, %s22
      %s25 = sphi 0, %s23
      %s26 = sphi 0, %s24
      %s27 = sphi 0, %s25
      %s37 = sphi 0, %s39
      %s40 = sphi 0, %s37
      %s41 = sphi 0, %s40
      %s57 = sphi 0, %s41
      %s63 = sphi 0, %s65
      %s66 = sphi 0, %s63
      %s67 = sphi 0, %s66
      %s83 = sphi 0, %s67
      %s91 = sphi 0, %s93
      %s94 = sphi 0, %s91
      %s95 = sphi 0, %s94
      %s111 = sphi 0, %s95
    $region4: #{tpu_custom_call.1} parent=1 // loop_header_branch
      %18 = sbr.rel (%p16) target = $region8
    $region5: #{tpu_custom_call.1} parent=1 // loop_body
      %s20 = ssub.s32 %s15, 1
      %s21 = ssub.s32 %s15, 2
      %s28 = sadd.s32 1, %s23
      %p29 = scmp.ge.s32.totalorder %s28, 1
      %s30 = scalar_select %p29, 0, %s28
      %s31 = sadd.s32 1, %s22
      %s32 = scalar_select %p29, %s31, %s22
      %p33 = scmp.ge.s32.totalorder %s32, 2
      %s34 = scalar_select %p33, 0, %s32
      %s35 = ssub.s32 %s22, %s34
      %p36 = scmp.eq.s32.totalorder %s35, 0
      %s38 = sadd.s32 %s37, 1
      %s39 = scalar_select %p36, %s37, %s38
      %p42 = pneg %p36
      %p43 = scmp.eq.s32.totalorder %s15, 1
      %p44 = por %p42, %p43
      %p45 = scmp.ne.s32.totalorder %s37, %s40
      %p46 = scmp.eq.s32.totalorder %s15, 0
      %p47 = por %p45, %p46
      %p48 = scmp.ne.s32.totalorder %s37, %s40
      %p49 = scmp.eq.s32.totalorder %s20, 1
      %p50 = por %p48, %p49
      %p51 = scmp.ne.s32.totalorder %s40, %s41
      %p52 = scmp.eq.s32.totalorder %s20, 0
      %p53 = por %p51, %p52
      %p54 = scmp.ne.s32.totalorder %s40, %s41
      %p55 = scmp.eq.s32.totalorder %s21, 1
      %p56 = por %p54, %p55
      %p58 = scmp.ne.s32.totalorder %s41, %s57
      %p59 = scmp.eq.s32.totalorder %s21, 0
      %p60 = por %p58, %p59
      %s61 = ssub.s32 %s23, %s30
      %p62 = scmp.eq.s32.totalorder %s61, 0
      %s64 = sadd.s32 %s63, 1
      %s65 = scalar_select %p62, %s63, %s64
      %p68 = pneg %p62
      %p69 = scmp.eq.s32.totalorder %s15, 1
      %p70 = por %p68, %p69
      %p71 = scmp.ne.s32.totalorder %s63, %s66
      %p72 = scmp.eq.s32.totalorder %s15, 0
      %p73 = por %p71, %p72
      %p74 = scmp.ne.s32.totalorder %s63, %s66
      %p75 = scmp.eq.s32.totalorder %s20, 1
      %p76 = por %p74, %p75
      %p77 = scmp.ne.s32.totalorder %s66, %s67
      %p78 = scmp.eq.s32.totalorder %s20, 0
      %p79 = por %p77, %p78
      %p80 = scmp.ne.s32.totalorder %s66, %s67
      %p81 = scmp.eq.s32.totalorder %s21, 1
      %p82 = por %p80, %p81
      %p84 = scmp.ne.s32.totalorder %s67, %s83
      %p85 = scmp.eq.s32.totalorder %s21, 0
      %p86 = por %p84, %p85
      %s87 = ssub.s32 %s22, %s34
      %s88 = ssub.s32 %s23, %s30
      %s89 = sor.u32 %s87, %s88
      %p90 = scmp.eq.s32.totalorder %s89, 0
      %s92 = sadd.s32 %s91, 1
      %s93 = scalar_select %p90, %s91, %s92
      %p96 = pneg %p90
      %p97 = scmp.eq.s32.totalorder %s15, 1
      %p98 = por %p96, %p97
      %p99 = scmp.ne.s32.totalorder %s91, %s94
      %p100 = scmp.eq.s32.totalorder %s15, 0
      %p101 = por %p99, %p100
      %p102 = scmp.ne.s32.totalorder %s91, %s94
      %p103 = scmp.eq.s32.totalorder %s20, 1
      %p104 = por %p102, %p103
      %p105 = scmp.ne.s32.totalorder %s94, %s95
      %p106 = scmp.eq.s32.totalorder %s20, 0
      %p107 = por %p105, %p106
      %p108 = scmp.ne.s32.totalorder %s94, %s95
      %p109 = scmp.eq.s32.totalorder %s21, 1
      %p110 = por %p108, %p109
      %p112 = scmp.ne.s32.totalorder %s95, %s111
      %p113 = scmp.eq.s32.totalorder %s21, 0
      %p114 = por %p112, %p113
      %p115 = scmp.le.s32.totalorder 1, %s15
      %p116 = scmp.lt.s32.totalorder %s15, 3
      %p117 = pnand %p115, %p116
      %p118 = pneg %p117
      // Predicated region
      $region9: #{tpu_custom_call.1} parent=5 // pred_check
        _
      $region10: #{tpu_custom_call.1} parent=5 // pred_check_branch
        %120 = sbr.rel (%p117) target = $region12
      $region11: #{tpu_custom_call.1} parent=5 // pred_region
        %s121 = ssub.s32 %s15, 1
        // Predicated region
        $region13: #{tpu_custom_call.1} parent=11 // pred_check
          %p122 = pneg %p79
        $region14: #{tpu_custom_call.1} parent=11 // pred_check_branch
          %124 = sbr.rel (%p122) target = $region16
        $region15: #{tpu_custom_call.1} parent=11 // pred_region
          %s126 = ssub.s32 128, 128
          %127 = vsyncadd [#allocation7], %s126
          %s128 = smul.addr %s25, 128
          %s129 = scalar_lea.hbm %s1, %s128
          %s131 = sshll.u32 [#allocation6], 4
          %s132 = int_to_ptr.vmem [resolvable:$true] %s131
          %134 = dma.hbm_to_vmem [thread:$0]  %s129, 128, %s132, [#allocation7]
        $region16: #{tpu_custom_call.1} parent=11 // pred_fallthru
          _
      $region12: #{tpu_custom_call.1} parent=5 // pred_fallthru
        _
      %p135 = scmp.lt.s32.totalorder %s15, 2
      // Predicated region
      $region17: #{tpu_custom_call.1} parent=5 // pred_check
        %p136 = pneg %p135
      $region18: #{tpu_custom_call.1} parent=5 // pred_check_branch
        %138 = sbr.rel (%p136) target = $region20
      $region19: #{tpu_custom_call.1} parent=5 // pred_region
        // Predicated region
        $region21: #{tpu_custom_call.1} parent=19 // pred_check
          %p139 = pneg %p47
        $region22: #{tpu_custom_call.1} parent=19 // pred_check_branch
          %141 = sbr.rel (%p139) target = $region24
        $region23: #{tpu_custom_call.1} parent=19 // pred_region
          %s142 = sand.u32 %s37, 1
          %s143 = scalar_lea.sflag [#allocation4], %s142
          %s144 = sand.u32 %s37, 1
          %s145 = smul.addr %s144, 24
          %s146 = scalar_lea.vmem [#allocation3], %s145
          %s148 = ssub.s32 384, 384
          %149 = vsyncadd %s143, %s148
          %s150 = smul.addr %s22, 3
          %s151 = smul.addr %s150, 128
          %s152 = scalar_lea.hbm %s0, %s151
          %s154 = sshll.u32 %s146, 4
          %s155 = int_to_ptr.vmem [resolvable:$true] %s154
          %157 = dma.hbm_to_vmem [thread:$0]  %s152, 384, %s155, %s143
        $region24: #{tpu_custom_call.1} parent=19 // pred_fallthru
          _
      $region20: #{tpu_custom_call.1} parent=5 // pred_fallthru
        _
      %p158 = scmp.le.s32.totalorder 1, %s15
      %p159 = scmp.lt.s32.totalorder %s15, 3
      %p160 = pnand %p158, %p159
      %p161 = pneg %p160
      // Predicated region
      $region25: #{tpu_custom_call.1} parent=5 // pred_check
        _
      $region26: #{tpu_custom_call.1} parent=5 // pred_check_branch
        %163 = sbr.rel (%p160) target = $region28
      $region27: #{tpu_custom_call.1} parent=5 // pred_region
        %s164 = ssub.s32 %s15, 1
        %s165 = sand.u32 %s40, 1
        %s166 = scalar_lea.sflag [#allocation4], %s165
        %s167 = sand.u32 %s40, 1
        %s168 = smul.addr %s167, 24
        %s169 = scalar_lea.vmem [#allocation3], %s168
        // Predicated region
        $region29: #{tpu_custom_call.1} parent=27 // pred_check
          %p170 = pneg %p53
        $region30: #{tpu_custom_call.1} parent=27 // pred_check_branch
          %172 = sbr.rel (%p170) target = $region32
        $region31: #{tpu_custom_call.1} parent=27 // pred_region
          %173 = dma.done %s166, 384
        $region32: #{tpu_custom_call.1} parent=27 // pred_fallthru
          _
        // Predicated region
        $region33: #{tpu_custom_call.1} parent=27 // pred_check
          %p174 = pneg %p79
        $region34: #{tpu_custom_call.1} parent=27 // pred_check_branch
          %176 = sbr.rel (%p174) target = $region36
        $region35: #{tpu_custom_call.1} parent=27 // pred_region
          %177 = dma.done [#allocation7], 128
        $region36: #{tpu_custom_call.1} parent=27 // pred_fallthru
          _
        %s178 = sand.u32 %s40, 1
        %s179 = scalar_lea.sflag [#allocation4], %s178
        %s180 = sand.u32 %s40, 1
        %s181 = smul.addr %s180, 24
        %s182 = scalar_lea.vmem [#allocation3], %s181
        %p183 = pneg %p53
        %p184 = pneg %p50
        %p185 = pneg %p79
        %p186 = pneg %p76
        %p187 = pneg %p107
        %p188 = pneg %p104
        %s189 = sand.u32 %s94, 1
        %s190 = scalar_lea.sflag [#allocation5], %s189
        %s191 = sand.u32 %s94, 1
        %s192 = smul.addr %s191, 16
        %s193 = scalar_lea.vmem [#allocation8], %s192
        %p194 = scmp.eq.s32.totalorder %s25, 0
        // Predicated region
        $region37: #{tpu_custom_call.1} parent=27 // pred_check
          %p195 = pneg %p194
        $region38: #{tpu_custom_call.1} parent=27 // pred_check_branch
          %197 = sbr.rel (%p195) target = $region40
        $region39: #{tpu_custom_call.1} parent=27 // pred_region
          %v198 = vld [vmem:[%s169] sm:$0xff]
          %v199 = vld [vmem:[%s169 + $0x8] sm:$0xff]
          %v200 = vld [vmem:[%s169 + $0x10] sm:$0xff]
          %201 = vst [vmem:[#allocation2] sm:$0xff] %v198
          %202 = vst [vmem:[#allocation2 + $0x8] sm:$0xff] %v199
          %vm203 = vcmask 261120
          %204 = vst.msk [vmem:[#allocation2 + $0x10] sm:$0xff] %vm203, %v200
          %v205 = vld [vmem:[%s169] sm:$0xff]
          %v206 = vld [vmem:[%s169 + $0x8] sm:$0xff]
          %v207 = vld [vmem:[%s169 + $0x10] sm:$0xff]
          %211 = vrot.lane.b32.xlu0 %v205, 127
          %v212 = vpop.permute.xlu0 %211
          %213 = vrot.lane.b32.xlu0 %v206, 127
          %v214 = vpop.permute.xlu0 %213
          %215 = vrot.lane.b32.xlu0 %v207, 127
          %v216 = vpop.permute.xlu0 %215
          %vm217 = vcmask 1039360
          %v218 = vsel %vm217, %v212, %v214
          %v219 = vsel %vm217, %v214, %v216
          %223 = vst [vmem:[#allocation2 + $0x18] sm:$0xff] %v218
          %224 = vst [vmem:[#allocation2 + $0x20] sm:$0xff] %v219
          %225 = vst.msk [vmem:[#allocation2 + $0x28] sm:$0xff] %vm203, %v216
          %v226 = vld [vmem:[%s169] sm:$0xff]
          %v227 = vld [vmem:[%s169 + $0x8] sm:$0xff]
          %v228 = vld [vmem:[%s169 + $0x10] sm:$0xff]
          %232 = vrot.lane.b32.xlu0 %v226, 126
          %v233 = vpop.permute.xlu0 %232
          %234 = vrot.lane.b32.xlu0 %v227, 126
          %v235 = vpop.permute.xlu0 %234
          %236 = vrot.lane.b32.xlu0 %v228, 126
          %v237 = vpop.permute.xlu0 %236
          %vm238 = vcmask 1031168
          %v239 = vsel %vm238, %v233, %v235
          %v240 = vsel %vm238, %v235, %v237
          %244 = vst [vmem:[#allocation2 + $0x30] sm:$0xff] %v239
          %245 = vst [vmem:[#allocation2 + $0x38] sm:$0xff] %v240
          %246 = vst.msk [vmem:[#allocation2 + $0x40] sm:$0xff] %vm203, %v237
          %v247 = vld [vmem:[%s169] sm:$0xff]
          %v248 = vld [vmem:[%s169 + $0x8] sm:$0xff]
          %v249 = vld [vmem:[%s169 + $0x10] sm:$0xff]
          %253 = vrot.lane.b32.xlu0 %v247, 110
          %v254 = vpop.permute.xlu0 %253
          %255 = vrot.lane.b32.xlu0 %v248, 110
          %v256 = vpop.permute.xlu0 %255
          %257 = vrot.lane.b32.xlu0 %v249, 110
          %v258 = vpop.permute.xlu0 %257
          %vm259 = vcmask 900096
          %v260 = vsel %vm259, %v254, %v256
          %v261 = vsel %vm259, %v256, %v258
          %265 = vst [vmem:[#allocation2 + $0x48] sm:$0xff] %v260
          %266 = vst [vmem:[#allocation2 + $0x50] sm:$0xff] %v261
          %267 = vst.msk [vmem:[#allocation2 + $0x58] sm:$0xff] %vm203, %v258
          %v268 = vld [vmem:[%s169] sm:$0xff]
          %v269 = vld [vmem:[%s169 + $0x8] sm:$0xff]
          %v270 = vld [vmem:[%s169 + $0x10] sm:$0xff]
          %274 = vrot.lane.b32.xlu0 %v268, 109
          %v275 = vpop.permute.xlu0 %274
          %276 = vrot.lane.b32.xlu0 %v269, 109
          %v277 = vpop.permute.xlu0 %276
          %278 = vrot.lane.b32.xlu0 %v270, 109
          %v279 = vpop.permute.xlu0 %278
          %vm280 = vcmask 891904
          %v281 = vsel %vm280, %v275, %v277
          %v282 = vsel %vm280, %v277, %v279
          %286 = vst [vmem:[#allocation2 + $0x60] sm:$0xff] %v281
          %287 = vst [vmem:[#allocation2 + $0x68] sm:$0xff] %v282
          %288 = vst.msk [vmem:[#allocation2 + $0x70] sm:$0xff] %vm203, %v279
          %v289 = vld [vmem:[%s169] sm:$0xff]
          %v290 = vld [vmem:[%s169 + $0x8] sm:$0xff]
          %v291 = vld [vmem:[%s169 + $0x10] sm:$0xff]
          %295 = vrot.lane.b32.xlu0 %v289, 108
          %v296 = vpop.permute.xlu0 %295
          %297 = vrot.lane.b32.xlu0 %v290, 108
          %v298 = vpop.permute.xlu0 %297
          %299 = vrot.lane.b32.xlu0 %v291, 108
          %v300 = vpop.permute.xlu0 %299
          %vm301 = vcmask 883712
          %v302 = vsel %vm301, %v296, %v298
          %v303 = vsel %vm301, %v298, %v300
          %307 = vst [vmem:[#allocation2 + $0x78] sm:$0xff] %v302
          %308 = vst [vmem:[#allocation2 + $0x80] sm:$0xff] %v303
          %309 = vst.msk [vmem:[#allocation2 + $0x88] sm:$0xff] %vm203, %v300
          %v310 = vld [vmem:[%s169] sm:$0xff]
          %v311 = vld [vmem:[%s169 + $0x8] sm:$0xff]
          %v312 = vld [vmem:[%s169 + $0x10] sm:$0xff]
          %316 = vrot.lane.b32.xlu0 %v310, 92
          %v317 = vpop.permute.xlu0 %316
          %318 = vrot.lane.b32.xlu0 %v311, 92
          %v319 = vpop.permute.xlu0 %318
          %320 = vrot.lane.b32.xlu0 %v312, 92
          %v321 = vpop.permute.xlu0 %320
          %vm322 = vcmask 752640
          %v323 = vsel %vm322, %v317, %v319
          %v324 = vsel %vm322, %v319, %v321
          %328 = vst [vmem:[#allocation2 + $0x90] sm:$0xff] %v323
          %329 = vst [vmem:[#allocation2 + $0x98] sm:$0xff] %v324
          %330 = vst.msk [vmem:[#allocation2 + $0xa0] sm:$0xff] %vm203, %v321
          %v331 = vld [vmem:[%s169] sm:$0xff]
          %v332 = vld [vmem:[%s169 + $0x8] sm:$0xff]
          %v333 = vld [vmem:[%s169 + $0x10] sm:$0xff]
          %337 = vrot.lane.b32.xlu0 %v331, 91
          %v338 = vpop.permute.xlu0 %337
          %339 = vrot.lane.b32.xlu0 %v332, 91
          %v340 = vpop.permute.xlu0 %339
          %341 = vrot.lane.b32.xlu0 %v333, 91
          %v342 = vpop.permute.xlu0 %341
          %vm343 = vcmask 744448
          %v344 = vsel %vm343, %v338, %v340
          %v345 = vsel %vm343, %v340, %v342
          %349 = vst [vmem:[#allocation2 + $0xa8] sm:$0xff] %v344
          %350 = vst [vmem:[#allocation2 + $0xb0] sm:$0xff] %v345
          %351 = vst.msk [vmem:[#allocation2 + $0xb8] sm:$0xff] %vm203, %v342
          %v352 = vld [vmem:[%s169] sm:$0xff]
          %v353 = vld [vmem:[%s169 + $0x8] sm:$0xff]
          %v354 = vld [vmem:[%s169 + $0x10] sm:$0xff]
          %358 = vrot.lane.b32.xlu0 %v352, 90
          %v359 = vpop.permute.xlu0 %358
          %360 = vrot.lane.b32.xlu0 %v353, 90
          %v361 = vpop.permute.xlu0 %360
          %362 = vrot.lane.b32.xlu0 %v354, 90
          %v363 = vpop.permute.xlu0 %362
          %vm364 = vcmask 736256
          %v365 = vsel %vm364, %v359, %v361
          %v366 = vsel %vm364, %v361, %v363
          %370 = vst [vmem:[#allocation2 + $0xc0] sm:$0xff] %v365
          %371 = vst [vmem:[#allocation2 + $0xc8] sm:$0xff] %v366
          %372 = vst.msk [vmem:[#allocation2 + $0xd0] sm:$0xff] %vm203, %v363
        $region40: #{tpu_custom_call.1} parent=27 // pred_fallthru
          _
        %v373 = vld [vmem:[#allocation6] sm:$0xff]
        %v374 = vld [vmem:[#allocation2] sm:$0xff]
        %v375 = vld [vmem:[#allocation2 + $0x8] sm:$0xff]
        %v376 = vld [vmem:[#allocation2 + $0x10] sm:$0xff]
        %v377 = vld [vmem:[#allocation2 + $0x18] sm:$0xff]
        %v378 = vld [vmem:[#allocation2 + $0x20] sm:$0xff]
        %v379 = vld [vmem:[#allocation2 + $0x28] sm:$0xff]
        %v380 = vld [vmem:[#allocation2 + $0x30] sm:$0xff]
        %v381 = vld [vmem:[#allocation2 + $0x38] sm:$0xff]
        %v382 = vld [vmem:[#allocation2 + $0x40] sm:$0xff]
        %v383 = vld [vmem:[#allocation2 + $0x48] sm:$0xff]
        %v384 = vld [vmem:[#allocation2 + $0x50] sm:$0xff]
        %v385 = vld [vmem:[#allocation2 + $0x58] sm:$0xff]
        %v386 = vld [vmem:[#allocation2 + $0x60] sm:$0xff]
        %v387 = vld [vmem:[#allocation2 + $0x68] sm:$0xff]
        %v388 = vld [vmem:[#allocation2 + $0x70] sm:$0xff]
        %v389 = vld [vmem:[#allocation2 + $0x78] sm:$0xff]
        %v390 = vld [vmem:[#allocation2 + $0x80] sm:$0xff]
        %v391 = vld [vmem:[#allocation2 + $0x88] sm:$0xff]
        %v392 = vld [vmem:[#allocation2 + $0x90] sm:$0xff]
        %v393 = vld [vmem:[#allocation2 + $0x98] sm:$0xff]
        %v394 = vld [vmem:[#allocation2 + $0xa0] sm:$0xff]
        %v395 = vld [vmem:[#allocation2 + $0xa8] sm:$0xff]
        %v396 = vld [vmem:[#allocation2 + $0xb0] sm:$0xff]
        %v397 = vld [vmem:[#allocation2 + $0xb8] sm:$0xff]
        %v398 = vld [vmem:[#allocation2 + $0xc0] sm:$0xff]
        %v399 = vld [vmem:[#allocation2 + $0xc8] sm:$0xff]
        %v400 = vld [vmem:[#allocation2 + $0xd0] sm:$0xff]
        %vm401 = vcmask 588800
        %v403 = vsel %vm401, %v373, 0
        %405 = vmatprep.subr.mxu0 %v375
        %406 = vmatpush1.msra.mxu0 %v374
        %407 = vmatprep.subr.mxu0 %v378
        %408 = vmatpush1.msra.mxu0 %v377
        %409 = vmatprep.subr.mxu0 %v381
        %410 = vmatpush1.msra.mxu0 %v380
        %411 = vmatprep.subr.mxu0 %v384
        %412 = vmatpush1.msra.mxu0 %v383
        %413 = vmatprep.subr.mxu0 %v387
        %414 = vmatpush1.msra.mxu0 %v386
        %415 = vmatprep.subr.mxu0 %v390
        %416 = vmatpush1.msra.mxu0 %v389
        %417 = vmatprep.subr.mxu0 %v393
        %418 = vmatpush1.msra.mxu0 %v392
        %419 = vmatprep.subr.mxu0 %v396
        %420 = vmatpush1.msra.mxu0 %v395
        %421 = vmatprep.subr.mxu0 %v399
        %422 = vmatpush1.msra.mxu0 %v398
        %423 = vmatprep.subr.mxu0 0.0
        %424 = vmatpush1.msra.mxu0 0.0
        %425 = vmatprep.subr.mxu0 0.0
        %426 = vmatpush1.msra.mxu0 0.0
        %427 = vmatprep.subr.mxu0 0.0
        %428 = vmatpush1.msra.mxu0 0.0
        %429 = vmatprep.subr.mxu0 0.0
        %430 = vmatpush1.msra.mxu0 0.0
        %431 = vmatprep.subr.mxu0 0.0
        %432 = vmatpush1.msra.mxu0 0.0
        %433 = vmatprep.subr.mxu0 0.0
        %434 = vmatpush1.msra.mxu0 0.0
        %435 = vmatprep.subr.mxu0 0.0
        %436 = vmatpush1.msra.mxu0 0.0
        %437 = vmatprep.subr.mxu0 0.0
        %438 = vmatpush1.msra.mxu0 0.0
        %439 = vmatprep.subr.mxu0 0.0
        %440 = vmatpush1.msra.mxu0 0.0
        %441 = vmatprep.subr.mxu0 0.0
        %442 = vmatpush1.msra.mxu0 0.0
        %443 = vmatprep.subr.mxu0 0.0
        %444 = vmatpush1.msra.mxu0 0.0
        %445 = vmatprep.subr.mxu0 0.0
        %446 = vmatpush1.msra.mxu0 0.0
        %447 = vmatprep.subr.mxu0 0.0
        %448 = vmatpush1.msra.mxu0 0.0
        %449 = vmatprep.subr.mxu0 0.0
        %450 = vmatpush1.msra.mxu0 0.0
        %451 = vmatprep.subr.mxu0 0.0
        %452 = vmatpush1.msra.mxu0 0.0
        %453 = vmatprep.subr.mxu0 0.0
        %454 = vmatpush1.msra.mxu0 0.0
        %455 = vmatprep.subr.mxu0 0.0
        %456 = vmatpush1.msra.mxu0 0.0
        %457 = vmatprep.subr.mxu0 0.0
        %458 = vmatpush1.msra.mxu0 0.0
        %459 = vmatprep.subr.mxu0 0.0
        %460 = vmatpush1.msra.mxu0 0.0
        %461 = vmatprep.subr.mxu0 0.0
        %462 = vmatpush1.msra.mxu0 0.0
        %463 = vmatprep.subr.mxu0 0.0
        %464 = vmatpush1.msra.mxu0 0.0
        %465 = vmatprep.subr.mxu0 0.0
        %466 = vmatpush1.msra.mxu0 0.0
        %467 = vmatprep.subr.mxu0 0.0
        %468 = vmatpush1.msra.mxu0 0.0
        %469 = vmatprep.mubr.f32.mxu0 0.0
        %470 = vmatmul.mubr.f32.gmra.mrb[0].mxu0 %v403
        %v471 = vpop.f32.mrb[0].mxu0
        %v472 = vadd.f32 0.0, %v471
        %v473 = vpop.f32.mrb[0].mxu0
        %v474 = vadd.f32 0.0, %v473
        %475 = vdwg.mxu0
        %476 = vmatprep.subr.mxu0 0.0
        %477 = vmatpush1.msra.mxu0 %v376
        %478 = vmatprep.subr.mxu0 0.0
        %479 = vmatpush1.msra.mxu0 %v379
        %480 = vmatprep.subr.mxu0 0.0
        %481 = vmatpush1.msra.mxu0 %v382
        %482 = vmatprep.subr.mxu0 0.0
        %483 = vmatpush1.msra.mxu0 %v385
        %484 = vmatprep.subr.mxu0 0.0
        %485 = vmatpush1.msra.mxu0 %v388
        %486 = vmatprep.subr.mxu0 0.0
        %487 = vmatpush1.msra.mxu0 %v391
        %488 = vmatprep.subr.mxu0 0.0
        %489 = vmatpush1.msra.mxu0 %v394
        %490 = vmatprep.subr.mxu0 0.0
        %491 = vmatpush1.msra.mxu0 %v397
        %492 = vmatprep.subr.mxu0 0.0
        %493 = vmatpush1.msra.mxu0 %v400
        %494 = vmatprep.subr.mxu0 0.0
        %495 = vmatpush1.msra.mxu0 0.0
        %496 = vmatprep.subr.mxu0 0.0
        %497 = vmatpush1.msra.mxu0 0.0
        %498 = vmatprep.subr.mxu0 0.0
        %499 = vmatpush1.msra.mxu0 0.0
        %500 = vmatprep.subr.mxu0 0.0
        %501 = vmatpush1.msra.mxu0 0.0
        %502 = vmatprep.subr.mxu0 0.0
        %503 = vmatpush1.msra.mxu0 0.0
        %504 = vmatprep.subr.mxu0 0.0
        %505 = vmatpush1.msra.mxu0 0.0
        %506 = vmatprep.subr.mxu0 0.0
        %507 = vmatpush1.msra.mxu0 0.0
        %508 = vmatprep.subr.mxu0 0.0
        %509 = vmatpush1.msra.mxu0 0.0
        %510 = vmatprep.subr.mxu0 0.0
        %511 = vmatpush1.msra.mxu0 0.0
        %512 = vmatprep.subr.mxu0 0.0
        %513 = vmatpush1.msra.mxu0 0.0
        %514 = vmatprep.subr.mxu0 0.0
        %515 = vmatpush1.msra.mxu0 0.0
        %516 = vmatprep.subr.mxu0 0.0
        %517 = vmatpush1.msra.mxu0 0.0
        %518 = vmatprep.subr.mxu0 0.0
        %519 = vmatpush1.msra.mxu0 0.0
        %520 = vmatprep.subr.mxu0 0.0
        %521 = vmatpush1.msra.mxu0 0.0
        %522 = vmatprep.subr.mxu0 0.0
        %523 = vmatpush1.msra.mxu0 0.0
        %524 = vmatprep.subr.mxu0 0.0
        %525 = vmatpush1.msra.mxu0 0.0
        %526 = vmatprep.subr.mxu0 0.0
        %527 = vmatpush1.msra.mxu0 0.0
        %528 = vmatprep.subr.mxu0 0.0
        %529 = vmatpush1.msra.mxu0 0.0
        %530 = vmatprep.subr.mxu0 0.0
        %531 = vmatpush1.msra.mxu0 0.0
        %532 = vmatprep.subr.mxu0 0.0
        %533 = vmatpush1.msra.mxu0 0.0
        %534 = vmatprep.subr.mxu0 0.0
        %535 = vmatpush1.msra.mxu0 0.0
        %536 = vmatprep.subr.mxu0 0.0
        %537 = vmatpush1.msra.mxu0 0.0
        %538 = vmatprep.subr.mxu0 0.0
        %539 = vmatpush1.msra.mxu0 0.0
        %540 = vmatprep.mubr.f32.mxu0 0.0
        %541 = vmatmul.mubr.f32.gmra.mrb[0].mxu0 %v403
        %v542 = vpop.f32.mrb[0].mxu0
        %v543 = vadd.f32 0.0, %v542
        %v544 = vpop.f32.mrb[0].mxu0
        %545 = vdwg.mxu0
        %vm546 = vcmask 130048
        %547 = vst.msk [vmem:[%s193] sm:$0xff] %vm546, %v472
        %549 = vrot.lane.b32.xlu0 %v472, 126
        %v550 = vpop.permute.xlu0 %549
        %vm552 = vcmask 261248
        %553 = vst.msk [vmem:[%s193] sm:$0xff] %vm552, %v550
        %554 = vrot.lane.b32.xlu0 %v472, 124
        %v555 = vpop.permute.xlu0 %554
        %vm557 = vcmask 392448
        %558 = vst.msk [vmem:[%s193] sm:$0xff] %vm557, %v555
        %559 = vrot.lane.b32.xlu0 %v472, 122
        %v560 = vpop.permute.xlu0 %559
        %vm562 = vcmask 523648
        %563 = vst.msk [vmem:[%s193] sm:$0xff] %vm562, %v560
        %564 = vrot.lane.b32.xlu0 %v472, 120
        %v565 = vpop.permute.xlu0 %564
        %vm567 = vcmask 654848
        %568 = vst.msk [vmem:[%s193] sm:$0xff] %vm567, %v565
        %569 = vrot.lane.b32.xlu0 %v472, 118
        %v570 = vpop.permute.xlu0 %569
        %vm572 = vcmask 786048
        %573 = vst.msk [vmem:[%s193] sm:$0xff] %vm572, %v570
        %574 = vrot.lane.b32.xlu0 %v472, 116
        %v575 = vpop.permute.xlu0 %574
        %vm577 = vcmask 917248
        %578 = vst.msk [vmem:[%s193] sm:$0xff] %vm577, %v575
        %580 = vrot.lane.b32.xlu0 %v472, 114
        %v581 = vpop.permute.xlu0 %580
        %582 = vrot.lane.b32.xlu0 %v474, 114
        %v583 = vpop.permute.xlu0 %582
        %vm584 = vcmask 932864
        %v585 = vsel %vm584, %v581, %v583
        %vm587 = vcmask 1048448
        %588 = vst.msk [vmem:[%s193] sm:$0xff] %vm587, %v585
        %589 = vrot.lane.b32.xlu0 %v474, 112
        %v590 = vpop.permute.xlu0 %589
        %592 = vst.msk [vmem:[%s193 + $0x8] sm:$0xff] %vm546, %v590
        %593 = vrot.lane.b32.xlu0 %v474, 110
        %v594 = vpop.permute.xlu0 %593
        %596 = vst.msk [vmem:[%s193 + $0x8] sm:$0xff] %vm552, %v594
        %597 = vrot.lane.b32.xlu0 %v474, 108
        %v598 = vpop.permute.xlu0 %597
        %600 = vst.msk [vmem:[%s193 + $0x8] sm:$0xff] %vm557, %v598
        %601 = vrot.lane.b32.xlu0 %v474, 106
        %v602 = vpop.permute.xlu0 %601
        %604 = vst.msk [vmem:[%s193 + $0x8] sm:$0xff] %vm562, %v602
        %605 = vrot.lane.b32.xlu0 %v474, 104
        %v606 = vpop.permute.xlu0 %605
        %608 = vst.msk [vmem:[%s193 + $0x8] sm:$0xff] %vm567, %v606
        %609 = vrot.lane.b32.xlu0 %v474, 102
        %v610 = vpop.permute.xlu0 %609
        %612 = vst.msk [vmem:[%s193 + $0x8] sm:$0xff] %vm572, %v610
        %614 = vrot.lane.b32.xlu0 %v474, 100
        %v615 = vpop.permute.xlu0 %614
        %616 = vrot.lane.b32.xlu0 %v543, 100
        %v617 = vpop.permute.xlu0 %616
        %vm618 = vcmask 818176
        %v619 = vsel %vm618, %v615, %v617
        %621 = vst.msk [vmem:[%s193 + $0x8] sm:$0xff] %vm577, %v619
        %622 = vrot.lane.b32.xlu0 %v543, 98
        %v623 = vpop.permute.xlu0 %622
        %625 = vst.msk [vmem:[%s193 + $0x8] sm:$0xff] %vm587, %v623
        %s626 = sand.u32 %s94, 1
        %s627 = scalar_lea.sflag [#allocation5], %s626
        %s628 = sand.u32 %s94, 1
        %s629 = smul.addr %s628, 16
        %s630 = scalar_lea.vmem [#allocation8], %s629
        // Predicated region
        $region41: #{tpu_custom_call.1} parent=27 // pred_check
          %p631 = pneg %p104
        $region42: #{tpu_custom_call.1} parent=27 // pred_check_branch
          %633 = sbr.rel (%p631) target = $region44
        $region43: #{tpu_custom_call.1} parent=27 // pred_region
          %s635 = ssub.s32 256, 256
          %636 = vsyncadd %s627, %s635
          %s637 = smul.addr %s25, 2
          %s638 = smul.addr %s24, 2
          %s639 = sadd.s32 %s637, %s638
          %s640 = smul.addr %s639, 128
          %s641 = scalar_lea.hbm %s2, %s640
          %s643 = sshll.u32 %s630, 4
          %s644 = int_to_ptr.vmem [resolvable:$true] %s643
          %646 = dma.vmem_to_hbm [thread:$0]  %s644, 256, %s641, %s627
        $region44: #{tpu_custom_call.1} parent=27 // pred_fallthru
          _
      $region28: #{tpu_custom_call.1} parent=5 // pred_fallthru
        _
      %p647 = scmp.le.s32.totalorder 2, %s15
      // Predicated region
      $region45: #{tpu_custom_call.1} parent=5 // pred_check
        %p648 = pneg %p647
      $region46: #{tpu_custom_call.1} parent=5 // pred_check_branch
        %650 = sbr.rel (%p648) target = $region48
      $region47: #{tpu_custom_call.1} parent=5 // pred_region
        %s651 = ssub.s32 %s15, 2
        // Predicated region
        $region49: #{tpu_custom_call.1} parent=47 // pred_check
          %p652 = pneg %p110
        $region50: #{tpu_custom_call.1} parent=47 // pred_check_branch
          %654 = sbr.rel (%p652) target = $region52
        $region51: #{tpu_custom_call.1} parent=47 // pred_region
          %s655 = sand.u32 %s95, 1
          %s656 = scalar_lea.sflag [#allocation5], %s655
          %s657 = sand.u32 %s95, 1
          %s658 = smul.addr %s657, 16
          %s659 = scalar_lea.vmem [#allocation8], %s658
          %660 = dma.done %s656, 256
        $region52: #{tpu_custom_call.1} parent=47 // pred_fallthru
          _
      $region48: #{tpu_custom_call.1} parent=5 // pred_fallthru
        _
    $region6: #{tpu_custom_call.1} parent=1 // loop_footer
      %s19 = sadd.s32 1, %s15
    $region7: #{tpu_custom_call.1} parent=1 // loop_footer_branch
      %14 = sbr.rel target = $region3
    $region8: #{tpu_custom_call.1} parent=1 // loop_exit
      _
    %661 = vsyncpa [#allocation4], 1
    %s662 = scalar_lea.sflag [#allocation4], 1
    %663 = vsyncpa %s662, 1
    %664 = vsyncpa [#allocation7], 1
    %665 = vsyncpa [#allocation5], 1
    %s666 = scalar_lea.sflag [#allocation5], 1
    %667 = vsyncpa %s666, 1

</llo_original>
